<compile_context>
chip_gen: v5e
topology: v5e:2x2
jax: 0.10.0
libtpu: 0.0.40
codegen_flags: <defaults>
</compile_context>

<pallas_src>
import functools

import numpy as np
import jax
import jax.numpy as jnp
from jax.experimental import pallas as pl
from jax.experimental.pallas import tpu as pltpu

_SUB = 8
_BN_EVAL_SCALE = float(1.0 / np.sqrt(1.0 + 1e-5))  # BatchNorm1d eval with init stats


def _rup(x, m):
    return ((x + m - 1) // m) * m


def _pad2(a, rows, cols, dtype=jnp.float32):
    a = jnp.asarray(a, jnp.float32)
    a = jnp.pad(a, ((0, rows - a.shape[0]), (0, cols - a.shape[1])))
    return a.astype(dtype)


# ----------------------------------------------------------------------------- kernel

def _net3_layer_kernel(x_ref, a_ref, p_ref,
                       w1_ref, b1_ref, w2_ref, b2_ref, w3_ref, b3_ref,
                       fw1_ref, fb1_ref, fw2_ref, fb2_ref,
                       o_ref, h_ref):
    """Grid axis = GIN layer.  Per step: h <- relu(MLP(A_hat @ h)); at the last step
    do the per-graph mean readout (pooling matmul) and fc1 -> relu -> fc2."""
    l = pl.program_id(0)
    last = pl.num_programs(0) - 1

    @pl.when(l == 0)
    def _():
        h_ref[...] = x_ref[...]

    h = h_ref[...]
    # GINConv (eps=0); self term folded into A_hat = A + I on the host.
    agg = jnp.dot(a_ref[...], h.astype(jnp.bfloat16),
                  preferred_element_type=jnp.float32)
    # MLP: fc1 -> bn1(folded) -> relu -> fc2 -> bn2(folded) -> relu -> fc3,
    # dropout = identity (eval); Net3 applies relu after every GINConv.
    z = jnp.dot(agg.astype(jnp.bfloat16), w1_ref[0],
                preferred_element_type=jnp.float32) + b1_ref[0]
    z = jnp.maximum(z, 0.0)
    z = jnp.dot(z.astype(jnp.bfloat16), w2_ref[0],
                preferred_element_type=jnp.float32) + b2_ref[0]
    z = jnp.maximum(z, 0.0)
    z = jnp.dot(z.astype(jnp.bfloat16), w3_ref[0],
                preferred_element_type=jnp.float32) + b3_ref[0]
    h = jnp.maximum(z, 0.0)
    h_ref[...] = h

    @pl.when(l == last)
    def _():
        # per-graph mean readout: P[g, n] = 1/|V_g| for batch[n] == g (zero on padding)
        r = jnp.dot(p_ref[...], h, preferred_element_type=jnp.float32)
        r = jnp.dot(r.astype(jnp.bfloat16), fw1_ref[...],
                    preferred_element_type=jnp.float32) + fb1_ref[...]
        r = jnp.maximum(r, 0.0)
        o_ref[...] = jnp.dot(r.astype(jnp.bfloat16), fw2_ref[...],
                             preferred_element_type=jnp.float32) + fb2_ref[...]


# ----------------------------------------------------------------------------- wrapper

_VMEM_SPEC = pl.BlockSpec(memory_space=pltpu.MemorySpace.VMEM)   # untiled, no dbl-buf


@functools.partial(jax.jit, static_argnames=("num_graphs", "num_classes"))
def net3_forward(x, a_hat, pool, packed, *, num_graphs, num_classes):
    N = x.shape[0]
    Np = a_hat.shape[0]
    num_layers, _, Fp = packed["W1s"].shape
    Gp = pool.shape[0]
    Cp = packed["fb2"].shape[1]

    xp = _pad2(x, Np, Fp)   # padded node rows / feature lanes are zero

    operands = (xp, a_hat, pool,
                packed["W1s"], packed["B1s"], packed["W2s"], packed["B2s"],
                packed["W3s"], packed["B3s"],
                packed["fw1"], packed["fb1"], packed["fw2"], packed["fb2"])

    layer_w = pl.BlockSpec((1, Fp, Fp), lambda l: (l, 0, 0))   # prefetched per layer
    layer_b = pl.BlockSpec((1, 1, Fp), lambda l: (l, 0, 0))
    in_specs = [
        _VMEM_SPEC, _VMEM_SPEC, _VMEM_SPEC,                         # x, A_hat, P
        layer_w, layer_b, layer_w, layer_b, layer_w, layer_b,       # stacked MLP params
        _VMEM_SPEC, _VMEM_SPEC, _VMEM_SPEC, _VMEM_SPEC,             # fc1/fc2
    ]

    out = pl.pallas_call(
        _net3_layer_kernel,
        out_shape=jax.ShapeDtypeStruct((Gp, Cp), jnp.float32),
        grid=(num_layers,),
        in_specs=in_specs,
        out_specs=pl.BlockSpec((Gp, Cp), lambda l: (0, 0)),         # resident accumulator
        scratch_shapes=[pltpu.VMEM((Np, Fp), jnp.float32)],         # node-feature carry
        compiler_params=pltpu.CompilerParams(dimension_semantics=("arbitrary",)),
    )(*operands)

    logits = out[:num_graphs, :num_classes]
    logp = jax.nn.log_softmax(logits, axis=-1)
    return logp, jnp.float32(0.0)     # loss1 + loss2 == 0 in Net3.forward


# ----------------------------------------------------------------------------- graph prep

def build_graph_operands(edge_index, batch, num_nodes, num_graphs):
    """Host-side (numpy, once per static graph structure): dense A_hat = A + I with
    scatter-ADD (edge multiplicities count, matching GIN sum-aggregation), and the
    per-graph mean pooling matrix P.  Padded rows/cols stay zero -> no leakage."""
    Np = _rup(max(num_nodes, _SUB), _SUB)
    Gp = _rup(max(num_graphs, _SUB), _SUB)

    ei = np.asarray(edge_index, np.int64)
    A = np.zeros((Np, Np), np.float32)
    if ei.size:
        np.add.at(A, (ei[1], ei[0]), 1.0)          # A[dst, src] += 1 (incoming edges)
    A[np.arange(num_nodes), np.arange(num_nodes)] += 1.0   # GIN eps=0 self term

    b = np.asarray(batch)
    P = np.zeros((Gp, Np), np.float32)
    for g in range(num_graphs):
        idx = np.where(b == g)[0]
        if idx.size:
            P[g, idx] = 1.0 / float(idx.size)

    return jnp.asarray(A, jnp.bfloat16), jnp.asarray(P, jnp.float32)


# ----------------------------------------------------------------------------- params

def init_linear(key, din, dout):
    k1, k2 = jax.random.split(key)
    bound = 1.0 / np.sqrt(din)
    w = jax.random.uniform(k1, (din, dout), jnp.float32, -bound, bound)
    b = jax.random.uniform(k2, (dout,), jnp.float32, -bound, bound)
    return w, b


def init_mlp(key, din, dh, dout):
    k1, k2, k3 = jax.random.split(key, 3)
    w1, b1 = init_linear(k1, din, dh)
    w2, b2 = init_linear(k2, dh, dh)
    w3, b3 = init_linear(k3, dh, dout)
    return dict(w1=w1, b1=b1, w2=w2, b2=b2, w3=w3, b3=b3)


def init_net3(key, input_dim, hidden_dim, num_classes):
    keys = jax.random.split(key, 7)
    return dict(
        gc1=init_mlp(keys[0], input_dim, hidden_dim, hidden_dim),
        gc2=init_mlp(keys[1], hidden_dim, hidden_dim, hidden_dim),
        gc3=init_mlp(keys[2], hidden_dim, hidden_dim, hidden_dim),
        gc4=init_mlp(keys[3], hidden_dim, hidden_dim, hidden_dim),
        gc5=init_mlp(keys[4], hidden_dim, hidden_dim, hidden_dim),
        fc1=init_linear(keys[5], hidden_dim, hidden_dim),
        fc2=init_linear(keys[6], hidden_dim, num_classes),
    )


def pack_params(params):
    """Compact pad (multiples of 8, not 128) + stack per-layer GIN/MLP weights as bf16;
    fold eval-BatchNorm scale into fc1/fc2 of each MLP; biases stay f32."""
    input_dim = params["gc1"]["w1"].shape[0]
    hidden = params["gc1"]["w1"].shape[1]
    num_classes = params["fc2"][0].shape[1]
    Fp = max(_rup(input_dim, _SUB), _rup(hidden, _SUB))
    Cp = _rup(num_classes, _SUB)
    s = _BN_EVAL_SCALE

    W1s, B1s, W2s, B2s, W3s, B3s = [], [], [], [], [], []
    for name in ("gc1", "gc2", "gc3", "gc4", "gc5"):
        p = params[name]
        W1s.append(_pad2(p["w1"] * s, Fp, Fp, jnp.bfloat16))
        B1s.append(_pad2((p["b1"] * s)[None, :], 1, Fp))
        W2s.append(_pad2(p["w2"] * s, Fp, Fp, jnp.bfloat16))
        B2s.append(_pad2((p["b2"] * s)[None, :], 1, Fp))
        W3s.append(_pad2(p["w3"], Fp, Fp, jnp.bfloat16))
        B3s.append(_pad2(p["b3"][None, :], 1, Fp))

    fw1, fb1 = params["fc1"]
    fw2, fb2 = params["fc2"]
    return dict(
        W1s=jnp.stack(W1s), B1s=jnp.stack(B1s),
        W2s=jnp.stack(W2s), B2s=jnp.stack(B2s),
        W3s=jnp.stack(W3s), B3s=jnp.stack(B3s),
        fw1=_pad2(fw1, Fp, Fp, jnp.bfloat16), fb1=_pad2(fb1[None, :], 1, Fp),
        fw2=_pad2(fw2, Fp, Cp, jnp.bfloat16), fb2=_pad2(fb2[None, :], 1, Cp),
    )


# ----------------------------------------------------------------------------- main

if __name__ == "__main__":
    input_dim, hidden_dim, num_classes = 6, 32, 3

    root = jax.random.PRNGKey(0)
    pkey, xkey = jax.random.split(root)
    params = init_net3(pkey, input_dim, hidden_dim, num_classes)
    packed = pack_params(params)

    # Two graphs of 6 nodes each: nodes 0..4 form a 5-cycle, node 5 is isolated.
    edges = []

    def add_cycle(offset, n):
        for i in range(n):
            a, b = offset + i, offset + (i + 1) % n
            edges.append((a, b))
            edges.append((b, a))

    add_cycle(0, 5)
    add_cycle(6, 5)
    edge_index = np.array(edges, dtype=np.int32).T                     # (2, 20)
    batch = np.array([0] * 6 + [1] * 6, dtype=np.int32)                # (12,)
    x = jax.random.normal(xkey, (12, input_dim), jnp.float32)

    a_hat, pool = build_graph_operands(edge_index, batch,
                                       num_nodes=12, num_graphs=2)

    logp, total_loss = net3_forward(x, a_hat, pool, packed,
                                    num_graphs=2, num_classes=num_classes)
    jax.block_until_ready(logp)
    jax.block_until_ready(total_loss)
    print("KERNEL_OK")
</pallas_src>

<mosaic_0001>
module attributes {stable_mosaic.version = 11 : i64} {
  func.func @_net3_layer_kernel(%arg0: i32, %arg1: memref<16x32xf32, #tpu.memory_space<vmem>>, %arg2: memref<16x16xbf16, #tpu.memory_space<vmem>>, %arg3: memref<8x16xf32, #tpu.memory_space<vmem>>, %arg4: memref<1x32x32xbf16, #tpu.memory_space<vmem>>, %arg5: memref<1x1x32xf32, #tpu.memory_space<vmem>>, %arg6: memref<1x32x32xbf16, #tpu.memory_space<vmem>>, %arg7: memref<1x1x32xf32, #tpu.memory_space<vmem>>, %arg8: memref<1x32x32xbf16, #tpu.memory_space<vmem>>, %arg9: memref<1x1x32xf32, #tpu.memory_space<vmem>>, %arg10: memref<32x32xbf16, #tpu.memory_space<vmem>>, %arg11: memref<1x32xf32, #tpu.memory_space<vmem>>, %arg12: memref<32x8xbf16, #tpu.memory_space<vmem>>, %arg13: memref<1x8xf32, #tpu.memory_space<vmem>>, %arg14: memref<8x8xf32, #tpu.memory_space<vmem>>, %arg15: memref<16x32xf32, #tpu.memory_space<vmem>>) attributes {dimension_semantics = [#tpu.dimension_semantics<arbitrary>], iteration_bounds = array<i64: 5>, scalar_prefetch = 0 : i64, scratch_operands = 1 : i64, tpu.core_type = #tpu.core_type<tc>, window_params = [{pipeline_mode = #tpu.pipeline_mode<synchronous>, transform_indices = @transform_0, window_bounds = array<i64: 16, 32>}, {pipeline_mode = #tpu.pipeline_mode<synchronous>, transform_indices = @transform_1, window_bounds = array<i64: 16, 16>}, {pipeline_mode = #tpu.pipeline_mode<synchronous>, transform_indices = @transform_2, window_bounds = array<i64: 8, 16>}, {transform_indices = @transform_3, window_bounds = array<i64: 1, 32, 32>}, {transform_indices = @transform_4, window_bounds = array<i64: 1, 1, 32>}, {transform_indices = @transform_5, window_bounds = array<i64: 1, 32, 32>}, {transform_indices = @transform_6, window_bounds = array<i64: 1, 1, 32>}, {transform_indices = @transform_7, window_bounds = array<i64: 1, 32, 32>}, {transform_indices = @transform_8, window_bounds = array<i64: 1, 1, 32>}, {pipeline_mode = #tpu.pipeline_mode<synchronous>, transform_indices = @transform_9, window_bounds = array<i64: 32, 32>}, {pipeline_mode = #tpu.pipeline_mode<synchronous>, transform_indices = @transform_10, window_bounds = array<i64: 1, 32>}, {pipeline_mode = #tpu.pipeline_mode<synchronous>, transform_indices = @transform_11, window_bounds = array<i64: 32, 8>}, {pipeline_mode = #tpu.pipeline_mode<synchronous>, transform_indices = @transform_12, window_bounds = array<i64: 1, 8>}, {pipeline_mode = #tpu.pipeline_mode<synchronous>, transform_indices = @transform_13, window_bounds = array<i64: 8, 8>}]} {
    %c0_i32 = arith.constant 0 : i32
    %0 = arith.cmpi eq, %arg0, %c0_i32 : i32
    %1 = arith.extui %0 : i1 to i32
    %c0_i32_0 = arith.constant 0 : i32
    %2 = arith.cmpi ne, %1, %c0_i32_0 : i32
    scf.if %2 {
      %c0_31 = arith.constant 0 : index
      %c0_32 = arith.constant 0 : index
      %41 = vector.load %arg1[%c0_31, %c0_32] : memref<16x32xf32, #tpu.memory_space<vmem>>, vector<16x32xf32>
      %c0_33 = arith.constant 0 : index
      %c0_34 = arith.constant 0 : index
      %42 = vector.load %arg15[%c0_33, %c0_34] : memref<16x32xf32, #tpu.memory_space<vmem>>, vector<16x32xf32>
      tpu.vector_store %arg15[%c0_33, %c0_34], %41 {strides = array<i32>} : memref<16x32xf32, #tpu.memory_space<vmem>>, vector<16x32xf32>,
    } else {
    }
    %c0 = arith.constant 0 : index
    %c0_1 = arith.constant 0 : index
    %3 = vector.load %arg15[%c0, %c0_1] : memref<16x32xf32, #tpu.memory_space<vmem>>, vector<16x32xf32>
    %c0_2 = arith.constant 0 : index
    %c0_3 = arith.constant 0 : index
    %4 = vector.load %arg2[%c0_2, %c0_3] : memref<16x16xbf16, #tpu.memory_space<vmem>>, vector<16x16xbf16>
    %5 = arith.truncf %3 : vector<16x32xf32> to vector<16x32xbf16>
    %cst = arith.constant dense<0.000000e+00> : vector<16x32xf32>
    %6 = tpu.matmul %4, %5, %cst {dimension_numbers = #tpu.dot_dimension_numbers<[1], [0], [0], [1], [0, 0, 1, 1], [], []>} : vector<16x16xbf16>, vector<16x32xbf16>, vector<16x32xf32> -> vector<16x32xf32>
    %7 = arith.truncf %6 : vector<16x32xf32> to vector<16x32xbf16>
    %c0_4 = arith.constant 0 : index
    %c0_5 = arith.constant 0 : index
    %c0_6 = arith.constant 0 : index
    %8 = vector.load %arg4[%c0_4, %c0_5, %c0_6] : memref<1x32x32xbf16, #tpu.memory_space<vmem>>, vector<1x32x32xbf16>
    %9 = vector.shape_cast %8 : vector<1x32x32xbf16> to vector<32x32xbf16>
    %cst_7 = arith.constant dense<0.000000e+00> : vector<16x32xf32>
    %10 = tpu.matmul %7, %9, %cst_7 {dimension_numbers = #tpu.dot_dimension_numbers<[1], [0], [0], [1], [0, 0, 1, 1], [], []>} : vector<16x32xbf16>, vector<32x32xbf16>, vector<16x32xf32> -> vector<16x32xf32>
    %c0_8 = arith.constant 0 : index
    %c0_9 = arith.constant 0 : index
    %c0_10 = arith.constant 0 : index
    %11 = vector.load %arg5[%c0_8, %c0_9, %c0_10] : memref<1x1x32xf32, #tpu.memory_space<vmem>>, vector<1x1x32xf32>
    %12 = vector.shape_cast %11 : vector<1x1x32xf32> to vector<1x32xf32>
    %13 = vector.broadcast %12 : vector<1x32xf32> to vector<16x32xf32>
    %14 = arith.addf %10, %13 : vector<16x32xf32>
    %cst_11 = arith.constant 0.000000e+00 : f32
    %15 = vector.broadcast %cst_11 : f32 to vector<16x32xf32>
    %16 = arith.maximumf %14, %15 : vector<16x32xf32>
    %17 = arith.truncf %16 : vector<16x32xf32> to vector<16x32xbf16>
    %c0_12 = arith.constant 0 : index
    %c0_13 = arith.constant 0 : index
    %c0_14 = arith.constant 0 : index
    %18 = vector.load %arg6[%c0_12, %c0_13, %c0_14] : memref<1x32x32xbf16, #tpu.memory_space<vmem>>, vector<1x32x32xbf16>
    %19 = vector.shape_cast %18 : vector<1x32x32xbf16> to vector<32x32xbf16>
    %cst_15 = arith.constant dense<0.000000e+00> : vector<16x32xf32>
    %20 = tpu.matmul %17, %19, %cst_15 {dimension_numbers = #tpu.dot_dimension_numbers<[1], [0], [0], [1], [0, 0, 1, 1], [], []>} : vector<16x32xbf16>, vector<32x32xbf16>, vector<16x32xf32> -> vector<16x32xf32>
    %c0_16 = arith.constant 0 : index
    %c0_17 = arith.constant 0 : index
    %c0_18 = arith.constant 0 : index
    %21 = vector.load %arg7[%c0_16, %c0_17, %c0_18] : memref<1x1x32xf32, #tpu.memory_space<vmem>>, vector<1x1x32xf32>
    %22 = vector.shape_cast %21 : vector<1x1x32xf32> to vector<1x32xf32>
    %23 = vector.broadcast %22 : vector<1x32xf32> to vector<16x32xf32>
    %24 = arith.addf %20, %23 : vector<16x32xf32>
    %cst_19 = arith.constant 0.000000e+00 : f32
    %25 = vector.broadcast %cst_19 : f32 to vector<16x32xf32>
    %26 = arith.maximumf %24, %25 : vector<16x32xf32>
    %27 = arith.truncf %26 : vector<16x32xf32> to vector<16x32xbf16>
    %c0_20 = arith.constant 0 : index
    %c0_21 = arith.constant 0 : index
    %c0_22 = arith.constant 0 : index
    %28 = vector.load %arg8[%c0_20, %c0_21, %c0_22] : memref<1x32x32xbf16, #tpu.memory_space<vmem>>, vector<1x32x32xbf16>
    %29 = vector.shape_cast %28 : vector<1x32x32xbf16> to vector<32x32xbf16>
    %cst_23 = arith.constant dense<0.000000e+00> : vector<16x32xf32>
    %30 = tpu.matmul %27, %29, %cst_23 {dimension_numbers = #tpu.dot_dimension_numbers<[1], [0], [0], [1], [0, 0, 1, 1], [], []>} : vector<16x32xbf16>, vector<32x32xbf16>, vector<16x32xf32> -> vector<16x32xf32>
    %c0_24 = arith.constant 0 : index
    %c0_25 = arith.constant 0 : index
    %c0_26 = arith.constant 0 : index
    %31 = vector.load %arg9[%c0_24, %c0_25, %c0_26] : memref<1x1x32xf32, #tpu.memory_space<vmem>>, vector<1x1x32xf32>
    %32 = vector.shape_cast %31 : vector<1x1x32xf32> to vector<1x32xf32>
    %33 = vector.broadcast %32 : vector<1x32xf32> to vector<16x32xf32>
    %34 = arith.addf %30, %33 : vector<16x32xf32>
    %cst_27 = arith.constant 0.000000e+00 : f32
    %35 = vector.broadcast %cst_27 : f32 to vector<16x32xf32>
    %36 = arith.maximumf %34, %35 : vector<16x32xf32>
    %c0_28 = arith.constant 0 : index
    %c0_29 = arith.constant 0 : index
    %37 = vector.load %arg15[%c0_28, %c0_29] : memref<16x32xf32, #tpu.memory_space<vmem>>, vector<16x32xf32>
    tpu.vector_store %arg15[%c0_28, %c0_29], %36 {strides = array<i32>} : memref<16x32xf32, #tpu.memory_space<vmem>>, vector<16x32xf32>,
    %c4_i32 = arith.constant 4 : i32
    %38 = arith.cmpi eq, %arg0, %c4_i32 : i32
    %39 = arith.extui %38 : i1 to i32
    %c0_i32_30 = arith.constant 0 : i32
    %40 = arith.cmpi ne, %39, %c0_i32_30 : i32
    scf.if %40 {
      %c0_31 = arith.constant 0 : index
      %c0_32 = arith.constant 0 : index
      %41 = vector.load %arg3[%c0_31, %c0_32] : memref<8x16xf32, #tpu.memory_space<vmem>>, vector<8x16xf32>
      %cst_33 = arith.constant dense<0.000000e+00> : vector<8x32xf32>
      %42 = tpu.matmul %41, %36, %cst_33 {dimension_numbers = #tpu.dot_dimension_numbers<[1], [0], [0], [1], [0, 0, 1, 1], [], []>} : vector<8x16xf32>, vector<16x32xf32>, vector<8x32xf32> -> vector<8x32xf32>
      %43 = arith.truncf %42 : vector<8x32xf32> to vector<8x32xbf16>
      %c0_34 = arith.constant 0 : index
      %c0_35 = arith.constant 0 : index
      %44 = vector.load %arg10[%c0_34, %c0_35] : memref<32x32xbf16, #tpu.memory_space<vmem>>, vector<32x32xbf16>
      %cst_36 = arith.constant dense<0.000000e+00> : vector<8x32xf32>
      %45 = tpu.matmul %43, %44, %cst_36 {dimension_numbers = #tpu.dot_dimension_numbers<[1], [0], [0], [1], [0, 0, 1, 1], [], []>} : vector<8x32xbf16>, vector<32x32xbf16>, vector<8x32xf32> -> vector<8x32xf32>
      %c0_37 = arith.constant 0 : index
      %c0_38 = arith.constant 0 : index
      %46 = vector.load %arg11[%c0_37, %c0_38] : memref<1x32xf32, #tpu.memory_space<vmem>>, vector<1x32xf32>
      %47 = vector.broadcast %46 : vector<1x32xf32> to vector<8x32xf32>
      %48 = arith.addf %45, %47 : vector<8x32xf32>
      %cst_39 = arith.constant 0.000000e+00 : f32
      %49 = vector.broadcast %cst_39 : f32 to vector<8x32xf32>
      %50 = arith.maximumf %48, %49 : vector<8x32xf32>
      %51 = arith.truncf %50 : vector<8x32xf32> to vector<8x32xbf16>
      %c0_40 = arith.constant 0 : index
      %c0_41 = arith.constant 0 : index
      %52 = vector.load %arg12[%c0_40, %c0_41] : memref<32x8xbf16, #tpu.memory_space<vmem>>, vector<32x8xbf16>
      %cst_42 = arith.constant dense<0.000000e+00> : vector<8x8xf32>
      %53 = tpu.matmul %51, %52, %cst_42 {dimension_numbers = #tpu.dot_dimension_numbers<[1], [0], [0], [1], [0, 0, 1, 1], [], []>} : vector<8x32xbf16>, vector<32x8xbf16>, vector<8x8xf32> -> vector<8x8xf32>
      %c0_43 = arith.constant 0 : index
      %c0_44 = arith.constant 0 : index
      %54 = vector.load %arg13[%c0_43, %c0_44] : memref<1x8xf32, #tpu.memory_space<vmem>>, vector<1x8xf32>
      %55 = vector.broadcast %54 : vector<1x8xf32> to vector<8x8xf32>
      %56 = arith.addf %53, %55 : vector<8x8xf32>
      %c0_45 = arith.constant 0 : index
      %c0_46 = arith.constant 0 : index
      %57 = vector.load %arg14[%c0_45, %c0_46] : memref<8x8xf32, #tpu.memory_space<vmem>>, vector<8x8xf32>
      tpu.vector_store %arg14[%c0_45, %c0_46], %56 {strides = array<i32>} : memref<8x8xf32, #tpu.memory_space<vmem>>, vector<8x8xf32>,
    } else {
    }
    return
  }
  func.func @transform_0(%arg0: i32) -> (i32, i32) {
    %c0_i32 = arith.constant 0 : i32
    %c0_i32_0 = arith.constant 0 : i32
    %c0_i32_1 = arith.constant 0 : i32
    return %c0_i32, %c0_i32_0 : i32, i32
  }
  func.func @transform_1(%arg0: i32) -> (i32, i32) {
    %c0_i32 = arith.constant 0 : i32
    %c0_i32_0 = arith.constant 0 : i32
    %c0_i32_1 = arith.constant 0 : i32
    return %c0_i32, %c0_i32_0 : i32, i32
  }
  func.func @transform_2(%arg0: i32) -> (i32, i32) {
    %c0_i32 = arith.constant 0 : i32
    %c0_i32_0 = arith.constant 0 : i32
    %c0_i32_1 = arith.constant 0 : i32
    return %c0_i32, %c0_i32_0 : i32, i32
  }
  func.func @transform_3(%arg0: i32) -> (i32, i32, i32) {
    %c0_i32 = arith.constant 0 : i32
    %c0_i32_0 = arith.constant 0 : i32
    %c0_i32_1 = arith.constant 0 : i32
    return %arg0, %c0_i32, %c0_i32_0 : i32, i32, i32
  }
  func.func @transform_4(%arg0: i32) -> (i32, i32, i32) {
    %c0_i32 = arith.constant 0 : i32
    %c0_i32_0 = arith.constant 0 : i32
    %c0_i32_1 = arith.constant 0 : i32
    return %arg0, %c0_i32, %c0_i32_0 : i32, i32, i32
  }
  func.func @transform_5(%arg0: i32) -> (i32, i32, i32) {
    %c0_i32 = arith.constant 0 : i32
    %c0_i32_0 = arith.constant 0 : i32
    %c0_i32_1 = arith.constant 0 : i32
    return %arg0, %c0_i32, %c0_i32_0 : i32, i32, i32
  }
  func.func @transform_6(%arg0: i32) -> (i32, i32, i32) {
    %c0_i32 = arith.constant 0 : i32
    %c0_i32_0 = arith.constant 0 : i32
    %c0_i32_1 = arith.constant 0 : i32
    return %arg0, %c0_i32, %c0_i32_0 : i32, i32, i32
  }
  func.func @transform_7(%arg0: i32) -> (i32, i32, i32) {
    %c0_i32 = arith.constant 0 : i32
    %c0_i32_0 = arith.constant 0 : i32
    %c0_i32_1 = arith.constant 0 : i32
    return %arg0, %c0_i32, %c0_i32_0 : i32, i32, i32
  }
  func.func @transform_8(%arg0: i32) -> (i32, i32, i32) {
    %c0_i32 = arith.constant 0 : i32
    %c0_i32_0 = arith.constant 0 : i32
    %c0_i32_1 = arith.constant 0 : i32
    return %arg0, %c0_i32, %c0_i32_0 : i32, i32, i32
  }
  func.func @transform_9(%arg0: i32) -> (i32, i32) {
    %c0_i32 = arith.constant 0 : i32
    %c0_i32_0 = arith.constant 0 : i32
    %c0_i32_1 = arith.constant 0 : i32
    return %c0_i32, %c0_i32_0 : i32, i32
  }
  func.func @transform_10(%arg0: i32) -> (i32, i32) {
    %c0_i32 = arith.constant 0 : i32
    %c0_i32_0 = arith.constant 0 : i32
    %c0_i32_1 = arith.constant 0 : i32
    return %c0_i32, %c0_i32_0 : i32, i32
  }
  func.func @transform_11(%arg0: i32) -> (i32, i32) {
    %c0_i32 = arith.constant 0 : i32
    %c0_i32_0 = arith.constant 0 : i32
    %c0_i32_1 = arith.constant 0 : i32
    return %c0_i32, %c0_i32_0 : i32, i32
  }
  func.func @transform_12(%arg0: i32) -> (i32, i32) {
    %c0_i32 = arith.constant 0 : i32
    %c0_i32_0 = arith.constant 0 : i32
    %c0_i32_1 = arith.constant 0 : i32
    return %c0_i32, %c0_i32_0 : i32, i32
  }
  func.func @transform_13(%arg0: i32) -> (i32, i32) {
    %c0_i32 = arith.constant 0 : i32
    %c0_i32_0 = arith.constant 0 : i32
    %c0_i32_1 = arith.constant 0 : i32
    return %c0_i32, %c0_i32_0 : i32, i32
  }
}

</mosaic_0001>

<llo_original>
// kernel: net3_forward.1
$region0: #{net3_forward.1}
  #allocation0 [shape = 'u32[]', space=smem, size = 0x4, offset = 0x4, fixed_abs, tag = 'smem constant byte address 0x4 - core index']
  #allocation1 [shape = 'u32[72,128]{1,0:T(1,128)}', space=vmem, size = 0x9000, scoped, tag = 'internal scratch']
  #allocation2 [shape = 'f32[16,32]{1,0:T(8,128)}', space=vmem, size = 0x2000, scoped, tag = 'scratch operand']
  %s0 = inlined_call_operand.vmem [shape: f32[16,32], index: 0, kind: input, shape index: {}]
  %s1 = inlined_call_operand.vmem [shape: bf16[16,16], index: 1, kind: input, shape index: {}]
  %s2 = inlined_call_operand.vmem [shape: f32[8,16], index: 2, kind: input, shape index: {}]
  %s3 = inlined_call_operand.hbm [shape: bf16[5,32,32], index: 3, kind: input, shape index: {}]
  %s4 = inlined_call_operand.vmem [shape: f32[5,1,32], index: 4, kind: input, shape index: {}]
  %s5 = inlined_call_operand.hbm [shape: bf16[5,32,32], index: 5, kind: input, shape index: {}]
  %s6 = inlined_call_operand.vmem [shape: f32[5,1,32], index: 6, kind: input, shape index: {}]
  %s7 = inlined_call_operand.hbm [shape: bf16[5,32,32], index: 7, kind: input, shape index: {}]
  %s8 = inlined_call_operand.vmem [shape: f32[5,1,32], index: 8, kind: input, shape index: {}]
  %s9 = inlined_call_operand.vmem [shape: bf16[32,32], index: 9, kind: input, shape index: {}]
  %s10 = inlined_call_operand.vmem [shape: f32[1,32], index: 10, kind: input, shape index: {}]
  %s11 = inlined_call_operand.vmem [shape: bf16[32,8], index: 11, kind: input, shape index: {}]
  %s12 = inlined_call_operand.vmem [shape: f32[1,8], index: 12, kind: input, shape index: {}]
  %s13 = inlined_call_operand.vmem [shape: f32[8,8], index: 13, kind: output, shape index: {}]
  %s14 = sld [smem:[#allocation0]]
  $region105: #{net3_forward.1} parent=0
    _
  %s16 = ssub.s32 1, %s14
  %s17 = scalar_select 0, %s16, %s14
  $region1: #{net3_forward.1} parent=0
    #allocation3 [shape = 'u8[16384]{0}', space=vmem, size = 0x4000, scoped, tag = 'input window, operand 3']
    #allocation4 [shape = 's32[2]{0}', space=sflag, size = 0x8, scoped, tag = 'scoped memory for net3_forward.1']
    #allocation5 [shape = 'u8[16384]{0}', space=vmem, size = 0x4000, scoped, tag = 'input window, operand 5']
    #allocation6 [shape = 's32[2]{0}', space=sflag, size = 0x8, scoped, tag = 'scoped memory for net3_forward.1']
    #allocation7 [shape = 'u8[16384]{0}', space=vmem, size = 0x4000, scoped, tag = 'input window, operand 7']
    %18 = vsyncpa [#allocation4], 0
    %s19 = scalar_lea.sflag [#allocation4], 1
    %20 = vsyncpa %s19, 0
    %21 = vsyncpa [#allocation6], 0
    %s22 = scalar_lea.sflag [#allocation6], 1
    %23 = vsyncpa %s22, 0
    loop: start=0, step=1, limit=7
    $region2: #{net3_forward.1} parent=1 // loop_pre_header
      _
    $region3: #{net3_forward.1} parent=1 // loop_header
      %s25 = sphi 0, %s29
      %p26 = scmp.ge.s32.totalorder %s25, 7
      %s33 = sphi 0, %s33
      %s35 = sphi 0, %s33
      %s36 = sphi 0, %s35
      %s50 = sphi 0, %s36
      %s54 = sphi 0, %s54
      %s56 = sphi 0, %s54
      %s57 = sphi 0, %s56
      %s71 = sphi 0, %s57
      %s75 = sphi 0, %s75
      %s77 = sphi 0, %s75
      %s78 = sphi 0, %s77
      %s92 = sphi 0, %s78
      %s98 = sphi 0, %s100
      %s101 = sphi 0, %s98
      %s102 = sphi 0, %s101
      %s118 = sphi 0, %s102
      %s124 = sphi 0, %s126
      %s127 = sphi 0, %s124
      %s128 = sphi 0, %s127
      %s144 = sphi 0, %s128
      %s150 = sphi 0, %s152
      %s153 = sphi 0, %s150
      %s154 = sphi 0, %s153
      %s170 = sphi 0, %s154
      %s176 = sphi 0, %s178
      %s179 = sphi 0, %s176
      %s180 = sphi 0, %s179
      %s196 = sphi 0, %s180
      %s202 = sphi 0, %s204
      %s205 = sphi 0, %s202
      %s206 = sphi 0, %s205
      %s222 = sphi 0, %s206
      %s228 = sphi 0, %s230
      %s231 = sphi 0, %s228
      %s232 = sphi 0, %s231
      %s248 = sphi 0, %s232
      %s252 = sphi 0, %s252
      %s254 = sphi 0, %s252
      %s255 = sphi 0, %s254
      %s269 = sphi 0, %s255
      %s273 = sphi 0, %s273
      %s275 = sphi 0, %s273
      %s276 = sphi 0, %s275
      %s290 = sphi 0, %s276
      %s294 = sphi 0, %s294
      %s296 = sphi 0, %s294
      %s297 = sphi 0, %s296
      %s311 = sphi 0, %s297
      %s315 = sphi 0, %s315
      %s317 = sphi 0, %s315
      %s318 = sphi 0, %s317
      %s332 = sphi 0, %s318
      %s336 = sphi 0, %s336
      %s338 = sphi 0, %s336
      %s339 = sphi 0, %s338
      %s353 = sphi 0, %s339
    $region4: #{net3_forward.1} parent=1 // loop_header_branch
      %28 = sbr.rel (%p26) target = $region8
    $region5: #{net3_forward.1} parent=1 // loop_body
      %s30 = ssub.s32 %s25, 1
      %s31 = ssub.s32 %s25, 2
      %s32 = sadd.s32 %s25, 1
      %s34 = sadd.s32 %s33, 1
      %p37 = scmp.eq.s32.totalorder %s25, 4
      %p38 = scmp.ne.s32.totalorder %s33, %s35
      %p39 = scmp.eq.s32.totalorder %s25, 0
      %p40 = por %p38, %p39
      %p41 = scmp.ne.s32.totalorder %s33, %s35
      %p42 = scmp.eq.s32.totalorder %s30, 4
      %p43 = por %p41, %p42
      %p44 = scmp.ne.s32.totalorder %s35, %s36
      %p45 = scmp.eq.s32.totalorder %s30, 0
      %p46 = por %p44, %p45
      %p47 = scmp.ne.s32.totalorder %s35, %s36
      %p48 = scmp.eq.s32.totalorder %s31, 4
      %p49 = por %p47, %p48
      %p51 = scmp.ne.s32.totalorder %s36, %s50
      %p52 = scmp.eq.s32.totalorder %s31, 0
      %p53 = por %p51, %p52
      %s55 = sadd.s32 %s54, 1
      %p58 = scmp.eq.s32.totalorder %s25, 4
      %p59 = scmp.ne.s32.totalorder %s54, %s56
      %p60 = scmp.eq.s32.totalorder %s25, 0
      %p61 = por %p59, %p60
      %p62 = scmp.ne.s32.totalorder %s54, %s56
      %p63 = scmp.eq.s32.totalorder %s30, 4
      %p64 = por %p62, %p63
      %p65 = scmp.ne.s32.totalorder %s56, %s57
      %p66 = scmp.eq.s32.totalorder %s30, 0
      %p67 = por %p65, %p66
      %p68 = scmp.ne.s32.totalorder %s56, %s57
      %p69 = scmp.eq.s32.totalorder %s31, 4
      %p70 = por %p68, %p69
      %p72 = scmp.ne.s32.totalorder %s57, %s71
      %p73 = scmp.eq.s32.totalorder %s31, 0
      %p74 = por %p72, %p73
      %s76 = sadd.s32 %s75, 1
      %p79 = scmp.eq.s32.totalorder %s25, 4
      %p80 = scmp.ne.s32.totalorder %s75, %s77
      %p81 = scmp.eq.s32.totalorder %s25, 0
      %p82 = por %p80, %p81
      %p83 = scmp.ne.s32.totalorder %s75, %s77
      %p84 = scmp.eq.s32.totalorder %s30, 4
      %p85 = por %p83, %p84
      %p86 = scmp.ne.s32.totalorder %s77, %s78
      %p87 = scmp.eq.s32.totalorder %s30, 0
      %p88 = por %p86, %p87
      %p89 = scmp.ne.s32.totalorder %s77, %s78
      %p90 = scmp.eq.s32.totalorder %s31, 4
      %p91 = por %p89, %p90
      %p93 = scmp.ne.s32.totalorder %s78, %s92
      %p94 = scmp.eq.s32.totalorder %s31, 0
      %p95 = por %p93, %p94
      %s96 = ssub.s32 %s25, %s32
      %p97 = scmp.eq.s32.totalorder %s96, 0
      %s99 = sadd.s32 %s98, 1
      %s100 = scalar_select %p97, %s98, %s99
      %p103 = pneg %p97
      %p104 = scmp.eq.s32.totalorder %s25, 4
      %p105 = por %p103, %p104
      %p106 = scmp.ne.s32.totalorder %s98, %s101
      %p107 = scmp.eq.s32.totalorder %s25, 0
      %p108 = por %p106, %p107
      %p109 = scmp.ne.s32.totalorder %s98, %s101
      %p110 = scmp.eq.s32.totalorder %s30, 4
      %p111 = por %p109, %p110
      %p112 = scmp.ne.s32.totalorder %s101, %s102
      %p113 = scmp.eq.s32.totalorder %s30, 0
      %p114 = por %p112, %p113
      %p115 = scmp.ne.s32.totalorder %s101, %s102
      %p116 = scmp.eq.s32.totalorder %s31, 4
      %p117 = por %p115, %p116
      %p119 = scmp.ne.s32.totalorder %s102, %s118
      %p120 = scmp.eq.s32.totalorder %s31, 0
      %p121 = por %p119, %p120
      %s122 = ssub.s32 %s25, %s32
      %p123 = scmp.eq.s32.totalorder %s122, 0
      %s125 = sadd.s32 %s124, 1
      %s126 = scalar_select %p123, %s124, %s125
      %p129 = pneg %p123
      %p130 = scmp.eq.s32.totalorder %s25, 4
      %p131 = por %p129, %p130
      %p132 = scmp.ne.s32.totalorder %s124, %s127
      %p133 = scmp.eq.s32.totalorder %s25, 0
      %p134 = por %p132, %p133
      %p135 = scmp.ne.s32.totalorder %s124, %s127
      %p136 = scmp.eq.s32.totalorder %s30, 4
      %p137 = por %p135, %p136
      %p138 = scmp.ne.s32.totalorder %s127, %s128
      %p139 = scmp.eq.s32.totalorder %s30, 0
      %p140 = por %p138, %p139
      %p141 = scmp.ne.s32.totalorder %s127, %s128
      %p142 = scmp.eq.s32.totalorder %s31, 4
      %p143 = por %p141, %p142
      %p145 = scmp.ne.s32.totalorder %s128, %s144
      %p146 = scmp.eq.s32.totalorder %s31, 0
      %p147 = por %p145, %p146
      %s148 = ssub.s32 %s25, %s32
      %p149 = scmp.eq.s32.totalorder %s148, 0
      %s151 = sadd.s32 %s150, 1
      %s152 = scalar_select %p149, %s150, %s151
      %p155 = pneg %p149
      %p156 = scmp.eq.s32.totalorder %s25, 4
      %p157 = por %p155, %p156
      %p158 = scmp.ne.s32.totalorder %s150, %s153
      %p159 = scmp.eq.s32.totalorder %s25, 0
      %p160 = por %p158, %p159
      %p161 = scmp.ne.s32.totalorder %s150, %s153
      %p162 = scmp.eq.s32.totalorder %s30, 4
      %p163 = por %p161, %p162
      %p164 = scmp.ne.s32.totalorder %s153, %s154
      %p165 = scmp.eq.s32.totalorder %s30, 0
      %p166 = por %p164, %p165
      %p167 = scmp.ne.s32.totalorder %s153, %s154
      %p168 = scmp.eq.s32.totalorder %s31, 4
      %p169 = por %p167, %p168
      %p171 = scmp.ne.s32.totalorder %s154, %s170
      %p172 = scmp.eq.s32.totalorder %s31, 0
      %p173 = por %p171, %p172
      %s174 = ssub.s32 %s25, %s32
      %p175 = scmp.eq.s32.totalorder %s174, 0
      %s177 = sadd.s32 %s176, 1
      %s178 = scalar_select %p175, %s176, %s177
      %p181 = pneg %p175
      %p182 = scmp.eq.s32.totalorder %s25, 4
      %p183 = por %p181, %p182
      %p184 = scmp.ne.s32.totalorder %s176, %s179
      %p185 = scmp.eq.s32.totalorder %s25, 0
      %p186 = por %p184, %p185
      %p187 = scmp.ne.s32.totalorder %s176, %s179
      %p188 = scmp.eq.s32.totalorder %s30, 4
      %p189 = por %p187, %p188
      %p190 = scmp.ne.s32.totalorder %s179, %s180
      %p191 = scmp.eq.s32.totalorder %s30, 0
      %p192 = por %p190, %p191
      %p193 = scmp.ne.s32.totalorder %s179, %s180
      %p194 = scmp.eq.s32.totalorder %s31, 4
      %p195 = por %p193, %p194
      %p197 = scmp.ne.s32.totalorder %s180, %s196
      %p198 = scmp.eq.s32.totalorder %s31, 0
      %p199 = por %p197, %p198
      %s200 = ssub.s32 %s25, %s32
      %p201 = scmp.eq.s32.totalorder %s200, 0
      %s203 = sadd.s32 %s202, 1
      %s204 = scalar_select %p201, %s202, %s203
      %p207 = pneg %p201
      %p208 = scmp.eq.s32.totalorder %s25, 4
      %p209 = por %p207, %p208
      %p210 = scmp.ne.s32.totalorder %s202, %s205
      %p211 = scmp.eq.s32.totalorder %s25, 0
      %p212 = por %p210, %p211
      %p213 = scmp.ne.s32.totalorder %s202, %s205
      %p214 = scmp.eq.s32.totalorder %s30, 4
      %p215 = por %p213, %p214
      %p216 = scmp.ne.s32.totalorder %s205, %s206
      %p217 = scmp.eq.s32.totalorder %s30, 0
      %p218 = por %p216, %p217
      %p219 = scmp.ne.s32.totalorder %s205, %s206
      %p220 = scmp.eq.s32.totalorder %s31, 4
      %p221 = por %p219, %p220
      %p223 = scmp.ne.s32.totalorder %s206, %s222
      %p224 = scmp.eq.s32.totalorder %s31, 0
      %p225 = por %p223, %p224
      %s226 = ssub.s32 %s25, %s32
      %p227 = scmp.eq.s32.totalorder %s226, 0
      %s229 = sadd.s32 %s228, 1
      %s230 = scalar_select %p227, %s228, %s229
      %p233 = pneg %p227
      %p234 = scmp.eq.s32.totalorder %s25, 4
      %p235 = por %p233, %p234
      %p236 = scmp.ne.s32.totalorder %s228, %s231
      %p237 = scmp.eq.s32.totalorder %s25, 0
      %p238 = por %p236, %p237
      %p239 = scmp.ne.s32.totalorder %s228, %s231
      %p240 = scmp.eq.s32.totalorder %s30, 4
      %p241 = por %p239, %p240
      %p242 = scmp.ne.s32.totalorder %s231, %s232
      %p243 = scmp.eq.s32.totalorder %s30, 0
      %p244 = por %p242, %p243
      %p245 = scmp.ne.s32.totalorder %s231, %s232
      %p246 = scmp.eq.s32.totalorder %s31, 4
      %p247 = por %p245, %p246
      %p249 = scmp.ne.s32.totalorder %s232, %s248
      %p250 = scmp.eq.s32.totalorder %s31, 0
      %p251 = por %p249, %p250
      %s253 = sadd.s32 %s252, 1
      %p256 = scmp.eq.s32.totalorder %s25, 4
      %p257 = scmp.ne.s32.totalorder %s252, %s254
      %p258 = scmp.eq.s32.totalorder %s25, 0
      %p259 = por %p257, %p258
      %p260 = scmp.ne.s32.totalorder %s252, %s254
      %p261 = scmp.eq.s32.totalorder %s30, 4
      %p262 = por %p260, %p261
      %p263 = scmp.ne.s32.totalorder %s254, %s255
      %p264 = scmp.eq.s32.totalorder %s30, 0
      %p265 = por %p263, %p264
      %p266 = scmp.ne.s32.totalorder %s254, %s255
      %p267 = scmp.eq.s32.totalorder %s31, 4
      %p268 = por %p266, %p267
      %p270 = scmp.ne.s32.totalorder %s255, %s269
      %p271 = scmp.eq.s32.totalorder %s31, 0
      %p272 = por %p270, %p271
      %s274 = sadd.s32 %s273, 1
      %p277 = scmp.eq.s32.totalorder %s25, 4
      %p278 = scmp.ne.s32.totalorder %s273, %s275
      %p279 = scmp.eq.s32.totalorder %s25, 0
      %p280 = por %p278, %p279
      %p281 = scmp.ne.s32.totalorder %s273, %s275
      %p282 = scmp.eq.s32.totalorder %s30, 4
      %p283 = por %p281, %p282
      %p284 = scmp.ne.s32.totalorder %s275, %s276
      %p285 = scmp.eq.s32.totalorder %s30, 0
      %p286 = por %p284, %p285
      %p287 = scmp.ne.s32.totalorder %s275, %s276
      %p288 = scmp.eq.s32.totalorder %s31, 4
      %p289 = por %p287, %p288
      %p291 = scmp.ne.s32.totalorder %s276, %s290
      %p292 = scmp.eq.s32.totalorder %s31, 0
      %p293 = por %p291, %p292
      %s295 = sadd.s32 %s294, 1
      %p298 = scmp.eq.s32.totalorder %s25, 4
      %p299 = scmp.ne.s32.totalorder %s294, %s296
      %p300 = scmp.eq.s32.totalorder %s25, 0
      %p301 = por %p299, %p300
      %p302 = scmp.ne.s32.totalorder %s294, %s296
      %p303 = scmp.eq.s32.totalorder %s30, 4
      %p304 = por %p302, %p303
      %p305 = scmp.ne.s32.totalorder %s296, %s297
      %p306 = scmp.eq.s32.totalorder %s30, 0
      %p307 = por %p305, %p306
      %p308 = scmp.ne.s32.totalorder %s296, %s297
      %p309 = scmp.eq.s32.totalorder %s31, 4
      %p310 = por %p308, %p309
      %p312 = scmp.ne.s32.totalorder %s297, %s311
      %p313 = scmp.eq.s32.totalorder %s31, 0
      %p314 = por %p312, %p313
      %s316 = sadd.s32 %s315, 1
      %p319 = scmp.eq.s32.totalorder %s25, 4
      %p320 = scmp.ne.s32.totalorder %s315, %s317
      %p321 = scmp.eq.s32.totalorder %s25, 0
      %p322 = por %p320, %p321
      %p323 = scmp.ne.s32.totalorder %s315, %s317
      %p324 = scmp.eq.s32.totalorder %s30, 4
      %p325 = por %p323, %p324
      %p326 = scmp.ne.s32.totalorder %s317, %s318
      %p327 = scmp.eq.s32.totalorder %s30, 0
      %p328 = por %p326, %p327
      %p329 = scmp.ne.s32.totalorder %s317, %s318
      %p330 = scmp.eq.s32.totalorder %s31, 4
      %p331 = por %p329, %p330
      %p333 = scmp.ne.s32.totalorder %s318, %s332
      %p334 = scmp.eq.s32.totalorder %s31, 0
      %p335 = por %p333, %p334
      %s337 = sadd.s32 %s336, 1
      %p340 = scmp.eq.s32.totalorder %s25, 4
      %p341 = scmp.ne.s32.totalorder %s336, %s338
      %p342 = scmp.eq.s32.totalorder %s25, 0
      %p343 = por %p341, %p342
      %p344 = scmp.ne.s32.totalorder %s336, %s338
      %p345 = scmp.eq.s32.totalorder %s30, 4
      %p346 = por %p344, %p345
      %p347 = scmp.ne.s32.totalorder %s338, %s339
      %p348 = scmp.eq.s32.totalorder %s30, 0
      %p349 = por %p347, %p348
      %p350 = scmp.ne.s32.totalorder %s338, %s339
      %p351 = scmp.eq.s32.totalorder %s31, 4
      %p352 = por %p350, %p351
      %p354 = scmp.ne.s32.totalorder %s339, %s353
      %p355 = scmp.eq.s32.totalorder %s31, 0
      %p356 = por %p354, %p355
      %p357 = scmp.le.s32.totalorder 1, %s25
      %p358 = scmp.lt.s32.totalorder %s25, 6
      %p359 = pnand %p357, %p358
      %p360 = pneg %p359
      // Predicated region
      $region9: #{net3_forward.1} parent=5 // pred_check
        _
      $region10: #{net3_forward.1} parent=5 // pred_check_branch
        %362 = sbr.rel (%p359) target = $region12
      $region11: #{net3_forward.1} parent=5 // pred_region
        %s363 = ssub.s32 %s25, 1
        // Predicated region
        $region13: #{net3_forward.1} parent=11 // pred_check
          %p364 = pneg %p46
        $region14: #{net3_forward.1} parent=11 // pred_check_branch
          %366 = sbr.rel (%p364) target = $region16
        $region15: #{net3_forward.1} parent=11 // pred_region
          _
        $region16: #{net3_forward.1} parent=11 // pred_fallthru
          _
        // Predicated region
        $region17: #{net3_forward.1} parent=11 // pred_check
          %p367 = pneg %p67
        $region18: #{net3_forward.1} parent=11 // pred_check_branch
          %369 = sbr.rel (%p367) target = $region20
        $region19: #{net3_forward.1} parent=11 // pred_region
          _
        $region20: #{net3_forward.1} parent=11 // pred_fallthru
          _
        // Predicated region
        $region21: #{net3_forward.1} parent=11 // pred_check
          %p370 = pneg %p88
        $region22: #{net3_forward.1} parent=11 // pred_check_branch
          %372 = sbr.rel (%p370) target = $region24
        $region23: #{net3_forward.1} parent=11 // pred_region
          _
        $region24: #{net3_forward.1} parent=11 // pred_fallthru
          _
        // Predicated region
        $region25: #{net3_forward.1} parent=11 // pred_check
          %p373 = pneg %p265
        $region26: #{net3_forward.1} parent=11 // pred_check_branch
          %375 = sbr.rel (%p373) target = $region28
        $region27: #{net3_forward.1} parent=11 // pred_region
          _
        $region28: #{net3_forward.1} parent=11 // pred_fallthru
          _
        // Predicated region
        $region29: #{net3_forward.1} parent=11 // pred_check
          %p376 = pneg %p286
        $region30: #{net3_forward.1} parent=11 // pred_check_branch
          %378 = sbr.rel (%p376) target = $region32
        $region31: #{net3_forward.1} parent=11 // pred_region
          _
        $region32: #{net3_forward.1} parent=11 // pred_fallthru
          _
        // Predicated region
        $region33: #{net3_forward.1} parent=11 // pred_check
          %p379 = pneg %p307
        $region34: #{net3_forward.1} parent=11 // pred_check_branch
          %381 = sbr.rel (%p379) target = $region36
        $region35: #{net3_forward.1} parent=11 // pred_region
          _
        $region36: #{net3_forward.1} parent=11 // pred_fallthru
          _
        // Predicated region
        $region37: #{net3_forward.1} parent=11 // pred_check
          %p382 = pneg %p328
        $region38: #{net3_forward.1} parent=11 // pred_check_branch
          %384 = sbr.rel (%p382) target = $region40
        $region39: #{net3_forward.1} parent=11 // pred_region
          _
        $region40: #{net3_forward.1} parent=11 // pred_fallthru
          _
      $region12: #{net3_forward.1} parent=5 // pred_fallthru
        _
      %p385 = scmp.lt.s32.totalorder %s25, 5
      // Predicated region
      $region41: #{net3_forward.1} parent=5 // pred_check
        %p386 = pneg %p385
      $region42: #{net3_forward.1} parent=5 // pred_check_branch
        %388 = sbr.rel (%p386) target = $region44
      $region43: #{net3_forward.1} parent=5 // pred_region
        // Predicated region
        $region45: #{net3_forward.1} parent=43 // pred_check
          %p389 = pneg %p108
        $region46: #{net3_forward.1} parent=43 // pred_check_branch
          %391 = sbr.rel (%p389) target = $region48
        $region47: #{net3_forward.1} parent=43 // pred_region
          %s392 = sand.u32 %s98, 1
          %s393 = scalar_lea.sflag [#allocation4], %s392
          %s394 = sand.u32 %s98, 1
          %s395 = smul.addr %s394, 16
          %s396 = scalar_lea.vmem [#allocation3], %s395
          %398 = vsyncadd %s393, 0
          %s399 = smul.addr %s25, 4
          %s400 = smul.addr %s399, 4
          %s401 = scalar_lea.hbm %s3, %s400
          %s402 = sshll.u32 %s401, 4
          %s403 = int_to_ptr.hbm [resolvable:$true] %s402
          %s404 = sshll.u32 %s396, 4
          %s405 = int_to_ptr.vmem [resolvable:$true] %s404
          %410 = dma.hbm_to_vmem [thread:$0]  %s403, 256, %s405, %s393, 64, 64, 4
        $region48: #{net3_forward.1} parent=43 // pred_fallthru
          _
        // Predicated region
        $region49: #{net3_forward.1} parent=43 // pred_check
          %p411 = pneg %p134
        $region50: #{net3_forward.1} parent=43 // pred_check_branch
          %413 = sbr.rel (%p411) target = $region52
        $region51: #{net3_forward.1} parent=43 // pred_region
          %p414 = scmp.lt.s32.totalorder %s25, 4
          %s415 = scalar_select %p414, %s25, 4
          %s416 = scalar_lea.vmem %s4, %s415
        $region52: #{net3_forward.1} parent=43 // pred_fallthru
          _
        // Predicated region
        $region53: #{net3_forward.1} parent=43 // pred_check
          %p417 = pneg %p160
        $region54: #{net3_forward.1} parent=43 // pred_check_branch
          %419 = sbr.rel (%p417) target = $region56
        $region55: #{net3_forward.1} parent=43 // pred_region
          %s420 = sand.u32 %s25, 1
          %s421 = scalar_lea.sflag [#allocation6], %s420
          %s422 = sand.u32 %s150, 1
          %s423 = smul.addr %s422, 16
          %s424 = scalar_lea.vmem [#allocation5], %s423
          %426 = vsyncadd %s421, 0
          %s427 = smul.addr %s25, 4
          %s428 = smul.addr %s427, 4
          %s429 = scalar_lea.hbm %s5, %s428
          %s430 = sshll.u32 %s429, 4
          %s431 = int_to_ptr.hbm [resolvable:$true] %s430
          %s432 = sshll.u32 %s424, 4
          %s433 = int_to_ptr.vmem [resolvable:$true] %s432
          %438 = dma.hbm_to_vmem [thread:$0]  %s431, 256, %s433, %s421, 64, 64, 4
        $region56: #{net3_forward.1} parent=43 // pred_fallthru
          _
        // Predicated region
        $region57: #{net3_forward.1} parent=43 // pred_check
          %p439 = pneg %p186
        $region58: #{net3_forward.1} parent=43 // pred_check_branch
          %441 = sbr.rel (%p439) target = $region60
        $region59: #{net3_forward.1} parent=43 // pred_region
          %p442 = scmp.lt.s32.totalorder %s25, 4
          %s443 = scalar_select %p442, %s25, 4
          %s444 = scalar_lea.vmem %s6, %s443
        $region60: #{net3_forward.1} parent=43 // pred_fallthru
          _
        // Predicated region
        $region61: #{net3_forward.1} parent=43 // pred_check
          %p445 = pneg %p212
        $region62: #{net3_forward.1} parent=43 // pred_check_branch
          %447 = sbr.rel (%p445) target = $region64
        $region63: #{net3_forward.1} parent=43 // pred_region
          %s448 = sand.u32 %s25, 1
          %s449 = scalar_lea.sflag [#allocation6], %s448
          %s450 = sand.u32 %s202, 1
          %s451 = smul.addr %s450, 16
          %s452 = scalar_lea.vmem [#allocation7], %s451
          %454 = vsyncadd %s449, 0
          %s455 = smul.addr %s25, 4
          %s456 = smul.addr %s455, 4
          %s457 = scalar_lea.hbm %s7, %s456
          %s458 = sshll.u32 %s457, 4
          %s459 = int_to_ptr.hbm [resolvable:$true] %s458
          %s460 = sshll.u32 %s452, 4
          %s461 = int_to_ptr.vmem [resolvable:$true] %s460
          %466 = dma.hbm_to_vmem [thread:$0]  %s459, 256, %s461, %s449, 64, 64, 4
        $region64: #{net3_forward.1} parent=43 // pred_fallthru
          _
        // Predicated region
        $region65: #{net3_forward.1} parent=43 // pred_check
          %p467 = pneg %p238
        $region66: #{net3_forward.1} parent=43 // pred_check_branch
          %469 = sbr.rel (%p467) target = $region68
        $region67: #{net3_forward.1} parent=43 // pred_region
          %p470 = scmp.lt.s32.totalorder %s25, 4
          %s471 = scalar_select %p470, %s25, 4
          %s472 = scalar_lea.vmem %s8, %s471
        $region68: #{net3_forward.1} parent=43 // pred_fallthru
          _
      $region44: #{net3_forward.1} parent=5 // pred_fallthru
        _
      %p473 = scmp.le.s32.totalorder 1, %s25
      %p474 = scmp.lt.s32.totalorder %s25, 6
      %p475 = pnand %p473, %p474
      %p476 = pneg %p475
      // Predicated region
      $region69: #{net3_forward.1} parent=5 // pred_check
        _
      $region70: #{net3_forward.1} parent=5 // pred_check_branch
        %478 = sbr.rel (%p475) target = $region72
      $region71: #{net3_forward.1} parent=5 // pred_region
        %s479 = ssub.s32 %s25, 1
        %s480 = sand.u32 %s101, 1
        %s481 = scalar_lea.sflag [#allocation4], %s480
        %s482 = sand.u32 %s101, 1
        %s483 = smul.addr %s482, 16
        %s484 = scalar_lea.vmem [#allocation3], %s483
        // Predicated region
        $region73: #{net3_forward.1} parent=71 // pred_check
          %p485 = pneg %p114
        $region74: #{net3_forward.1} parent=71 // pred_check_branch
          %487 = sbr.rel (%p485) target = $region76
        $region75: #{net3_forward.1} parent=71 // pred_region
          %489 = dma.done %s481, 256
        $region76: #{net3_forward.1} parent=71 // pred_fallthru
          _
        %s490 = sand.u32 %s30, 1
        %s491 = scalar_lea.sflag [#allocation6], %s490
        %s492 = sand.u32 %s153, 1
        %s493 = smul.addr %s492, 16
        %s494 = scalar_lea.vmem [#allocation5], %s493
        // Predicated region
        $region77: #{net3_forward.1} parent=71 // pred_check
          %p495 = pneg %p166
        $region78: #{net3_forward.1} parent=71 // pred_check_branch
          %497 = sbr.rel (%p495) target = $region80
        $region79: #{net3_forward.1} parent=71 // pred_region
          %499 = dma.done %s491, 256
        $region80: #{net3_forward.1} parent=71 // pred_fallthru
          _
        %s500 = sand.u32 %s30, 1
        %s501 = scalar_lea.sflag [#allocation6], %s500
        %s502 = sand.u32 %s205, 1
        %s503 = smul.addr %s502, 16
        %s504 = scalar_lea.vmem [#allocation7], %s503
        // Predicated region
        $region81: #{net3_forward.1} parent=71 // pred_check
          %p505 = pneg %p218
        $region82: #{net3_forward.1} parent=71 // pred_check_branch
          %507 = sbr.rel (%p505) target = $region84
        $region83: #{net3_forward.1} parent=71 // pred_region
          %509 = dma.done %s501, 256
        $region84: #{net3_forward.1} parent=71 // pred_fallthru
          _
        %p510 = pneg %p46
        %p511 = pneg %p43
        %p512 = pneg %p67
        %p513 = pneg %p64
        %p514 = pneg %p88
        %p515 = pneg %p85
        %s516 = sand.u32 %s101, 1
        %s517 = scalar_lea.sflag [#allocation4], %s516
        %s518 = sand.u32 %s101, 1
        %s519 = smul.addr %s518, 16
        %s520 = scalar_lea.vmem [#allocation3], %s519
        %p521 = pneg %p114
        %p522 = pneg %p111
        %p523 = scmp.lt.s32.totalorder %s30, 4
        %s524 = scalar_select %p523, %s30, 4
        %s525 = scalar_lea.vmem %s4, %s524
        %p526 = pneg %p140
        %p527 = pneg %p137
        %s528 = sand.u32 %s30, 1
        %s529 = scalar_lea.sflag [#allocation6], %s528
        %s530 = sand.u32 %s153, 1
        %s531 = smul.addr %s530, 16
        %s532 = scalar_lea.vmem [#allocation5], %s531
        %p533 = pneg %p166
        %p534 = pneg %p163
        %p535 = scmp.lt.s32.totalorder %s30, 4
        %s536 = scalar_select %p535, %s30, 4
        %s537 = scalar_lea.vmem %s6, %s536
        %p538 = pneg %p192
        %p539 = pneg %p189
        %s540 = sand.u32 %s30, 1
        %s541 = scalar_lea.sflag [#allocation6], %s540
        %s542 = sand.u32 %s205, 1
        %s543 = smul.addr %s542, 16
        %s544 = scalar_lea.vmem [#allocation7], %s543
        %p545 = pneg %p218
        %p546 = pneg %p215
        %p547 = scmp.lt.s32.totalorder %s30, 4
        %s548 = scalar_select %p547, %s30, 4
        %s549 = scalar_lea.vmem %s8, %s548
        %p550 = pneg %p244
        %p551 = pneg %p241
        %p552 = pneg %p265
        %p553 = pneg %p262
        %p554 = pneg %p286
        %p555 = pneg %p283
        %p556 = pneg %p307
        %p557 = pneg %p304
        %p558 = pneg %p328
        %p559 = pneg %p325
        %p560 = pneg %p349
        %p561 = pneg %p346
        %p562 = scmp.lt.s32.totalorder %s30, 4
        %s563 = scalar_select %p562, %s30, 4
        %s564 = scalar_lea.vmem %s4, %s563
        %p565 = scmp.lt.s32.totalorder %s30, 4
        %s566 = scalar_select %p565, %s30, 4
        %s567 = scalar_lea.vmem %s6, %s566
        %p568 = scmp.lt.s32.totalorder %s30, 4
        %s569 = scalar_select %p568, %s30, 4
        %s570 = scalar_lea.vmem %s8, %s569
        %p572 = scmp.eq.s32.totalorder %s30, 0
        // Predicated region
        $region85: #{net3_forward.1} parent=71 // pred_check
          %p573 = pneg %p572
        $region86: #{net3_forward.1} parent=71 // pred_check_branch
          %575 = sbr.rel (%p573) target = $region88
        $region87: #{net3_forward.1} parent=71 // pred_region
          %v576 = vld [vmem:[%s0] sm:$0xff]
          %v577 = vld [vmem:[%s0 + $0x8] sm:$0xff]
          %vm578 = vcmask 261120
          %579 = vst.msk [vmem:[#allocation2] sm:$0xff] %vm578, %v576
          %580 = vst.msk [vmem:[#allocation2 + $0x8] sm:$0xff] %vm578, %v577
        $region88: #{net3_forward.1} parent=71 // pred_fallthru
          _
        %v581 = vld [vmem:[#allocation2] sm:$0xff]
        %v582 = vld [vmem:[#allocation2 + $0x8] sm:$0xff]
        %v583 = vld [vmem:[%s1] sm:$0xf]
        %v584 = vld [vmem:[%s1 + $0x4] sm:$0xf]
        %v585 = vpack.c.bf16 %v582, %v581
        %v588 = vunpack.c.l.b16 %v583
        %v589 = vunpack.c.l.b16 %v584
        %v590 = vpack.c.b16 %v589, %v588
        %vm591 = vcmask 130048
        %v593 = vsel %vm591, %v590, 0
        %595 = vmatpush.bf16.msra.mxu0 0
        %596 = vmatpush.bf16.msra.mxu0 0
        %597 = vmatpush.bf16.msra.mxu0 0
        %598 = vmatpush.bf16.msra.mxu0 0
        %599 = vmatpush.bf16.msra.mxu0 0
        %600 = vmatpush.bf16.msra.mxu0 0
        %601 = vmatpush.bf16.msra.mxu0 0
        %602 = vmatpush.bf16.msra.mxu0 %v585
        %603 = vmatmul.bf16.gmra.mxu0 %v593
        %v604 = vpop.f32.mrf.mxu0
        %v605 = vadd.f32 0.0, %v604
        %v606 = vpop.f32.mrf.mxu0
        %v607 = vadd.f32 0.0, %v606
        %608 = vdwg.mxu0
        %v609 = vpack.c.bf16 %v607, %v605
        %v610 = vld [vmem:[%s484] sm:$0xf]
        %v611 = vld [vmem:[%s484 + $0x4] sm:$0xf]
        %v612 = vld [vmem:[%s484 + $0x8] sm:$0xf]
        %v613 = vld [vmem:[%s484 + $0xc] sm:$0xf]
        %v614 = vld [vmem:[%s564] sm:$0x1]
        %v616 = vperm.slane %v614, 0
        %v622 = vunpack.c.l.b16 %v610
        %v623 = vunpack.c.l.b16 %v611
        %v624 = vunpack.c.l.b16 %v612
        %v625 = vunpack.c.l.b16 %v613
        %v626 = vpack.c.b16 %v623, %v622
        %v627 = vpack.c.b16 %v625, %v624
        %vm630 = vcmask 261120
        %v632 = vsel %vm630, %v609, 0
        %634 = vmatpush.bf16.msra.mxu0 0
        %635 = vmatpush.bf16.msra.mxu0 0
        %636 = vmatpush.bf16.msra.mxu0 0
        %637 = vmatpush.bf16.msra.mxu0 0
        %638 = vmatpush.bf16.msra.mxu0 0
        %639 = vmatpush.bf16.msra.mxu0 0
        %640 = vmatpush.bf16.msra.mxu0 %v627
        %641 = vmatpush.bf16.msra.mxu0 %v626
        %642 = vmatmul.bf16.gmra.mxu0 %v632
        %v643 = vpop.f32.mrf.mxu0
        %v644 = vadd.f32 %v616, %v643
        %v645 = vpop.f32.mrf.mxu0
        %v646 = vadd.f32 %v616, %v645
        %647 = vdwg.mxu0
        %v648 = vmax.f32 %v644, 0.0
        %v649 = vmax.f32 %v646, 0.0
        %v650 = vpack.c.bf16 %v649, %v648
        %v651 = vld [vmem:[%s494] sm:$0xf]
        %v652 = vld [vmem:[%s494 + $0x4] sm:$0xf]
        %v653 = vld [vmem:[%s494 + $0x8] sm:$0xf]
        %v654 = vld [vmem:[%s494 + $0xc] sm:$0xf]
        %v655 = vld [vmem:[%s567] sm:$0x1]
        %v657 = vperm.slane %v655, 0
        %v663 = vunpack.c.l.b16 %v651
        %v664 = vunpack.c.l.b16 %v652
        %v665 = vunpack.c.l.b16 %v653
        %v666 = vunpack.c.l.b16 %v654
        %v667 = vpack.c.b16 %v664, %v663
        %v668 = vpack.c.b16 %v666, %v665
        %v672 = vsel %vm630, %v650, 0
        %674 = vmatpush.bf16.msra.mxu0 0
        %675 = vmatpush.bf16.msra.mxu0 0
        %676 = vmatpush.bf16.msra.mxu0 0
        %677 = vmatpush.bf16.msra.mxu0 0
        %678 = vmatpush.bf16.msra.mxu0 0
        %679 = vmatpush.bf16.msra.mxu0 0
        %680 = vmatpush.bf16.msra.mxu0 %v668
        %681 = vmatpush.bf16.msra.mxu0 %v667
        %682 = vmatmul.bf16.gmra.mxu0 %v672
        %v683 = vpop.f32.mrf.mxu0
        %v684 = vadd.f32 %v657, %v683
        %v685 = vpop.f32.mrf.mxu0
        %v686 = vadd.f32 %v657, %v685
        %687 = vdwg.mxu0
        %v688 = vmax.f32 %v684, 0.0
        %v689 = vmax.f32 %v686, 0.0
        %v690 = vpack.c.bf16 %v689, %v688
        %v691 = vld [vmem:[%s504] sm:$0xf]
        %v692 = vld [vmem:[%s504 + $0x4] sm:$0xf]
        %v693 = vld [vmem:[%s504 + $0x8] sm:$0xf]
        %v694 = vld [vmem:[%s504 + $0xc] sm:$0xf]
        %v695 = vld [vmem:[%s570] sm:$0x1]
        %v697 = vperm.slane %v695, 0
        %v703 = vunpack.c.l.b16 %v691
        %v704 = vunpack.c.l.b16 %v692
        %v705 = vunpack.c.l.b16 %v693
        %v706 = vunpack.c.l.b16 %v694
        %v707 = vpack.c.b16 %v704, %v703
        %v708 = vpack.c.b16 %v706, %v705
        %v712 = vsel %vm630, %v690, 0
        %714 = vmatpush.bf16.msra.mxu0 0
        %715 = vmatpush.bf16.msra.mxu0 0
        %716 = vmatpush.bf16.msra.mxu0 0
        %717 = vmatpush.bf16.msra.mxu0 0
        %718 = vmatpush.bf16.msra.mxu0 0
        %719 = vmatpush.bf16.msra.mxu0 0
        %720 = vmatpush.bf16.msra.mxu0 %v708
        %721 = vmatpush.bf16.msra.mxu0 %v707
        %722 = vmatmul.bf16.gmra.mxu0 %v712
        %v723 = vpop.f32.mrf.mxu0
        %v724 = vadd.f32 %v697, %v723
        %v725 = vpop.f32.mrf.mxu0
        %v726 = vadd.f32 %v697, %v725
        %727 = vdwg.mxu0
        %v728 = vmax.f32 %v724, 0.0
        %v729 = vmax.f32 %v726, 0.0
        %730 = vst.msk [vmem:[#allocation2] sm:$0xff] %vm630, %v728
        %731 = vst.msk [vmem:[#allocation2 + $0x8] sm:$0xff] %vm630, %v729
        %p732 = scmp.eq.s32.totalorder %s30, 4
        // Predicated region
        $region89: #{net3_forward.1} parent=71 // pred_check
          %p733 = pneg %p732
        $region90: #{net3_forward.1} parent=71 // pred_check_branch
          %735 = sbr.rel (%p733) target = $region92
        $region91: #{net3_forward.1} parent=71 // pred_region
          %v736 = vld [vmem:[%s2] sm:$0xff]
          %v738 = vsel %vm591, %v736, 0
          %740 = vmatpush.msra.mxu0 0.0
          %741 = vmatpush.msra.mxu0 0.0
          %742 = vmatpush.msra.mxu0 0.0
          %743 = vmatpush.msra.mxu0 0.0
          %744 = vmatpush.msra.mxu0 0.0
          %745 = vmatpush.msra.mxu0 0.0
          %746 = vmatpush.msra.mxu0 0.0
          %747 = vmatpush.msra.mxu0 0.0
          %748 = vmatpush.msra.mxu0 0.0
          %749 = vmatpush.msra.mxu0 0.0
          %750 = vmatpush.msra.mxu0 0.0
          %751 = vmatpush.msra.mxu0 0.0
          %752 = vmatpush.msra.mxu0 0.0
          %753 = vmatpush.msra.mxu0 0.0
          %754 = vmatpush.msra.mxu0 %v729
          %755 = vmatpush.msra.mxu0 %v728
          %756 = vmatmul.f32.gmra.mxu0 %v738
          %v757 = vpop.f32.mrf.mxu0
          %v758 = vadd.f32 0.0, %v757
          %759 = vdwg.mxu0
          %v760 = vpack.c.bf16 %v758, %v758
          %v761 = vld [vmem:[%s9] sm:$0xf]
          %v762 = vld [vmem:[%s9 + $0x4] sm:$0xf]
          %v763 = vld [vmem:[%s9 + $0x8] sm:$0xf]
          %v764 = vld [vmem:[%s9 + $0xc] sm:$0xf]
          %v765 = vld [vmem:[%s10] sm:$0x1]
          %v767 = vperm.slane %v765, 0
          %v773 = vunpack.c.l.b16 %v761
          %v774 = vunpack.c.l.b16 %v762
          %v775 = vunpack.c.l.b16 %v763
          %v776 = vunpack.c.l.b16 %v764
          %v777 = vpack.c.b16 %v774, %v773
          %v778 = vpack.c.b16 %v776, %v775
          %v782 = vsel %vm630, %v760, 0
          %784 = vmatpush.bf16.msra.mxu0 0
          %785 = vmatpush.bf16.msra.mxu0 0
          %786 = vmatpush.bf16.msra.mxu0 0
          %787 = vmatpush.bf16.msra.mxu0 0
          %788 = vmatpush.bf16.msra.mxu0 0
          %789 = vmatpush.bf16.msra.mxu0 0
          %790 = vmatpush.bf16.msra.mxu0 %v778
          %791 = vmatpush.bf16.msra.mxu0 %v777
          %792 = vmatmul.bf16.gmra.mxu0 %v782
          %v793 = vpop.f32.mrf.mxu0
          %v794 = vadd.f32 %v767, %v793
          %v795 = vpop.f32.mrf.mxu0
          %796 = vdwg.mxu0
          %v797 = vmax.f32 %v794, 0.0
          %v798 = vpack.c.bf16 %v797, %v797
          %v799 = vld [vmem:[%s11] sm:$0xf]
          %v800 = vld [vmem:[%s11 + $0x4] sm:$0xf]
          %v801 = vld [vmem:[%s11 + $0x8] sm:$0xf]
          %v802 = vld [vmem:[%s11 + $0xc] sm:$0xf]
          %v803 = vld [vmem:[%s12] sm:$0x1]
          %v805 = vperm.slane %v803, 0
          %v811 = vunpack.c.l.b16 %v799
          %v812 = vunpack.c.l.b16 %v800
          %v813 = vunpack.c.l.b16 %v801
          %v814 = vunpack.c.l.b16 %v802
          %v815 = vpack.c.b16 %v812, %v811
          %v816 = vpack.c.b16 %v814, %v813
          %v820 = vsel %vm630, %v798, 0
          %822 = vmatpush.bf16.msra.mxu0 0
          %823 = vmatpush.bf16.msra.mxu0 0
          %824 = vmatpush.bf16.msra.mxu0 0
          %825 = vmatpush.bf16.msra.mxu0 0
          %826 = vmatpush.bf16.msra.mxu0 0
          %827 = vmatpush.bf16.msra.mxu0 0
          %828 = vmatpush.bf16.msra.mxu0 %v816
          %829 = vmatpush.bf16.msra.mxu0 %v815
          %830 = vmatmul.bf16.gmra.mxu0 %v820
          %v831 = vpop.f32.mrf.mxu0
          %v832 = vadd.f32 %v805, %v831
          %v833 = vpop.f32.mrf.mxu0
          %834 = vdwg.mxu0
          %vm835 = vcmask 64512
          %836 = vst.msk [vmem:[%s13] sm:$0xff] %vm835, %v832
        $region92: #{net3_forward.1} parent=71 // pred_fallthru
          _
        // Predicated region
        $region93: #{net3_forward.1} parent=71 // pred_check
          %p837 = pneg %p346
        $region94: #{net3_forward.1} parent=71 // pred_check_branch
          %839 = sbr.rel (%p837) target = $region96
        $region95: #{net3_forward.1} parent=71 // pred_region
          _
        $region96: #{net3_forward.1} parent=71 // pred_fallthru
          _
        // Predicated region
        $region97: #{net3_forward.1} parent=71 // pred_check
          %p840 = pneg %p346
        $region98: #{net3_forward.1} parent=71 // pred_check_branch
          %842 = sbr.rel (%p840) target = $region100
        $region99: #{net3_forward.1} parent=71 // pred_region
          _
        $region100: #{net3_forward.1} parent=71 // pred_fallthru
          _
      $region72: #{net3_forward.1} parent=5 // pred_fallthru
        _
      %p843 = scmp.le.s32.totalorder 2, %s25
      // Predicated region
      $region101: #{net3_forward.1} parent=5 // pred_check
        %p844 = pneg %p843
      $region102: #{net3_forward.1} parent=5 // pred_check_branch
        %846 = sbr.rel (%p844) target = $region104
      $region103: #{net3_forward.1} parent=5 // pred_region
        %s847 = ssub.s32 %s25, 2
      $region104: #{net3_forward.1} parent=5 // pred_fallthru
        _
    $region6: #{net3_forward.1} parent=1 // loop_footer
      %s29 = sadd.s32 1, %s25
    $region7: #{net3_forward.1} parent=1 // loop_footer_branch
      %24 = sbr.rel target = $region3
    $region8: #{net3_forward.1} parent=1 // loop_exit
      _
    %848 = vsyncpa [#allocation4], 1
    %s849 = scalar_lea.sflag [#allocation4], 1
    %850 = vsyncpa %s849, 1
    %851 = vsyncpa [#allocation6], 1
    %s852 = scalar_lea.sflag [#allocation6], 1
    %853 = vsyncpa %s852, 1

</llo_original>
